<compile_context>
chip_gen: v6e
topology: v6e:2x2x1
jax: 0.10.0
libtpu: 0.0.40
codegen_flags: <defaults>
</compile_context>

<pallas_src>
import functools

import jax
import jax.numpy as jnp
from jax.experimental import pallas as pl
from jax.experimental.pallas import tpu as pltpu


def _chip_info():
    """(vmem_capacity_bytes, num_tensorcores); conservative fallback."""
    try:
        cap = int(pltpu.get_tpu_info().vmem_capacity_bytes)
    except Exception:
        return 64 << 20, 1
    # v7x-class parts expose 64 MiB VMEM per TensorCore and have 2 TCs/chip;
    # v5e/v6e expose 128 MiB and have a single TC.
    return cap, (2 if cap <= (64 << 20) else 1)


def _pick_tile(batch, dim, itemsizes, vmem_cap):
    """Batch-tile size: large enough to amortize the ~0.35us/step grid
    overhead, small enough that pipelined inputs + f32 temporaries fit the
    generation's VMEM."""
    sub = 8 if min(itemsizes) >= 4 else 16            # sublane packing (f32 / bf16)
    small_vmem = vmem_cap <= (64 << 20)               # v7x class
    budget = (40 << 20) if small_vmem else (88 << 20)
    row_cap = 4096 if small_vmem else 8192
    # Per-row VMEM: 2 pipeline buffers per input + ~3 f32 working temporaries
    # (diff, diff^2, masked copy) from the in-kernel upcast/compute.
    per_row = 2 * dim * sum(itemsizes) + 3 * dim * 4
    tb = max(sub, min(row_cap, budget // max(1, per_row)))
    tb = max(sub, (tb // sub) * sub)
    padded_batch = -(-batch // sub) * sub
    return min(tb, padded_batch)


def _wmse_kernel(out_ref, tgt_ref, w_ref, acc_ref, *, batch, ragged):
    """Accumulate sum_rows(w * (out - tgt)^2) for one (tb, D) batch tile into a
    resident (1, 1, D) f32 accumulator (one per parallel slot)."""
    j = pl.program_id(1)
    tb = out_ref.shape[0]

    @pl.when(j == 0)
    def _init():
        acc_ref[...] = jnp.zeros_like(acc_ref)

    # In-kernel upcast: native dtype streams from HBM, f32 math on the VPU.
    diff = out_ref[...].astype(jnp.float32) - tgt_ref[...].astype(jnp.float32)
    dsq = diff * diff                                   # (tb, D) f32
    w = w_ref[0]                                        # (1, tb) lane-dense f32

    def accumulate(sq):
        # Weight multiply + row reduction on the MXU (frees VPU slots):
        # (1, tb) @ (tb, D) -> (1, D), exact f32 (HIGHEST => multi-pass f32).
        contrib = jnp.dot(w, sq, preferred_element_type=jnp.float32,
                          precision=jax.lax.Precision.HIGHEST)
        acc_ref[...] += contrib.reshape(acc_ref.shape)

    if not ragged:
        accumulate(dsq)                                 # aligned batch: no mask code
    else:
        p = pl.program_id(0)
        nj = pl.num_programs(1)
        row0 = (p * nj + j) * tb

        @pl.when(row0 + tb <= batch)                    # fast path: full tile
        def _full():
            accumulate(dsq)

        @pl.when(row0 + tb > batch)                     # only ragged / duplicated tile
        def _partial():
            # Rows >= batch were never written by the DMA (garbage, possibly
            # NaN/Inf): zero them before they can reach the MXU.  The matching
            # weights are already exact zeros from the wrapper-side padding.
            n_valid = batch - row0                      # <= 0 for a clamped dup tile
            rows = jax.lax.broadcasted_iota(jnp.int32, (tb, 1), 0)
            accumulate(jnp.where(rows < n_valid, dsq, 0.0))


def weighted_space_mse_loss(output, target, weights):
    """output, target: (B, D) float arrays; weights: (B,). Returns scalar f32."""
    B, D = output.shape
    assert target.shape == (B, D)
    weights = weights.reshape(-1)
    assert weights.shape[0] == B

    vmem_cap, num_tc = _chip_info()
    itemsizes = (jnp.dtype(output.dtype).itemsize, jnp.dtype(target.dtype).itemsize)
    tb = _pick_tile(B, D, itemsizes, vmem_cap)
    nb = -(-B // tb)                            # number of batch tiles
    P = 2 if (num_tc >= 2 and nb >= 2) else 1   # megacore split only on 2-TC parts
    J = -(-nb // P)                             # reduction steps per parallel slot
    ragged = (P * J * tb) != B                  # partial last tile / clamped dup tile

    # Weights: lane-dense, zero-padded to the tile grid, one contiguous (1, tb)
    # row per tile.  Padded entries are exact zeros, so a duplicated tile on an
    # uneven 2-core split contributes nothing.
    w_flat = weights.astype(jnp.float32)
    pad = P * J * tb - B
    if pad:
        w_flat = jnp.pad(w_flat, (0, pad))
    w_tiles = w_flat.reshape(P * J, 1, tb)

    def tile_idx(p, j):
        t = p * J + j
        if P * J > nb:
            # Clamp fully-out-of-range (duplicated) tiles onto a valid block;
            # their contribution is zeroed inside the kernel.
            t = jnp.minimum(t, nb - 1)
        return t

    in_map = lambda p, j: (tile_idx(p, j), 0)
    w_map = lambda p, j: (p * J + j, 0, 0)

    kernel = functools.partial(_wmse_kernel, batch=B, ragged=ragged)

    # Honest, generation-aware VMEM accounting.
    in_bytes = 2 * tb * D * sum(itemsizes)      # 2 pipeline buffers per input
    w_bytes = 2 * 8 * tb * 4                    # (1, tb) pads to 8 sublanes
    acc_bytes = 2 * 8 * D * 4                   # resident (1, 1, D) block
    tmp_bytes = 3 * tb * D * 4                  # diff / diff^2 / masked copy
    vmem_need = in_bytes + w_bytes + acc_bytes + tmp_bytes
    vmem_limit = int(min(vmem_cap, max(vmem_need + (4 << 20), 32 << 20)))

    parts = pl.pallas_call(
        kernel,
        out_shape=jax.ShapeDtypeStruct((P, 1, D), jnp.float32),
        grid_spec=pltpu.PrefetchScalarGridSpec(
            num_scalar_prefetch=0,
            grid=(P, J),
            in_specs=[
                pl.BlockSpec((tb, D), in_map),
                pl.BlockSpec((tb, D), in_map),
                pl.BlockSpec((1, 1, tb), w_map),
            ],
            out_specs=pl.BlockSpec((1, 1, D), lambda p, j: (p, 0, 0)),
        ),
        compiler_params=pltpu.CompilerParams(
            dimension_semantics=("parallel", "arbitrary"),
            vmem_limit_bytes=vmem_limit,
        ),
    )(output, target, w_tiles)

    # Single epilogue reduce + mean over the TRUE element count, outside kernel.
    return jnp.sum(parts) / jnp.float32(B * D)


if __name__ == "__main__":
    key = jax.random.PRNGKey(0)
    k1, k2, k3, k4, k5, k6 = jax.random.split(key, 6)

    def reference(o, t, w):
        b = o.shape[0]
        return jnp.mean(w.reshape(b, 1).astype(jnp.float32)
                        * (o.astype(jnp.float32) - t.astype(jnp.float32)) ** 2)

    # Case 1: aligned batch (fast path, no mask code emitted).
    B1, D1 = 16, 128
    out1 = jax.random.normal(k1, (B1, D1), dtype=jnp.float32)
    tgt1 = jax.random.normal(k2, (B1, D1), dtype=jnp.float32)
    w1 = jax.random.uniform(k3, (B1,), dtype=jnp.float32)
    loss1 = weighted_space_mse_loss(out1, tgt1, w1)
    jax.block_until_ready(loss1)
    ref1 = reference(out1, tgt1, w1)
    assert jnp.allclose(loss1, ref1, rtol=1e-5, atol=1e-6), (loss1, ref1)

    # Case 2: ragged batch + non-128 feature dim (exercises the masked branch).
    B2, D2 = 37, 192
    out2 = jax.random.normal(k4, (B2, D2), dtype=jnp.float32)
    tgt2 = jax.random.normal(k5, (B2, D2), dtype=jnp.float32)
    w2 = jax.random.uniform(k6, (B2,), dtype=jnp.float32)
    loss2 = weighted_space_mse_loss(out2, tgt2, w2)
    jax.block_until_ready(loss2)
    ref2 = reference(out2, tgt2, w2)
    assert jnp.allclose(loss2, ref2, rtol=1e-5, atol=1e-6), (loss2, ref2)

    print("KERNEL_OK")
</pallas_src>

<mosaic_0001>
module attributes {stable_mosaic.version = 11 : i64} {
  func.func @_wmse_kernel(%arg0: i32, %arg1: i32, %arg2: memref<16x128xf32, #tpu.memory_space<vmem>>, %arg3: memref<16x128xf32, #tpu.memory_space<vmem>>, %arg4: memref<1x1x16xf32, #tpu.memory_space<vmem>>, %arg5: memref<1x1x128xf32, #tpu.memory_space<vmem>>) attributes {dimension_semantics = [#tpu.dimension_semantics<parallel>, #tpu.dimension_semantics<arbitrary>], iteration_bounds = array<i64: 1, 1>, scalar_prefetch = 0 : i64, scratch_operands = 0 : i64, tpu.core_type = #tpu.core_type<tc>, window_params = [{transform_indices = @transform_0, window_bounds = array<i64: 16, 128>}, {transform_indices = @transform_1, window_bounds = array<i64: 16, 128>}, {transform_indices = @transform_2, window_bounds = array<i64: 1, 1, 16>}, {transform_indices = @transform_3, window_bounds = array<i64: 1, 1, 128>}]} {
    %c0_i32 = arith.constant 0 : i32
    %0 = arith.cmpi eq, %arg1, %c0_i32 : i32
    %1 = arith.extui %0 : i1 to i32
    %c0_i32_0 = arith.constant 0 : i32
    %2 = arith.cmpi ne, %1, %c0_i32_0 : i32
    scf.if %2 {
      %cst_13 = arith.constant 0.000000e+00 : f32
      %14 = vector.broadcast %cst_13 : f32 to vector<1x1x128xf32>
      %c0_14 = arith.constant 0 : index
      %c0_15 = arith.constant 0 : index
      %c0_16 = arith.constant 0 : index
      %15 = vector.load %arg5[%c0_14, %c0_15, %c0_16] : memref<1x1x128xf32, #tpu.memory_space<vmem>>, vector<1x1x128xf32>
      tpu.vector_store %arg5[%c0_14, %c0_15, %c0_16], %14 {strides = array<i32>} : memref<1x1x128xf32, #tpu.memory_space<vmem>>, vector<1x1x128xf32>,
    } else {
    }
    %c0 = arith.constant 0 : index
    %c0_1 = arith.constant 0 : index
    %3 = vector.load %arg2[%c0, %c0_1] : memref<16x128xf32, #tpu.memory_space<vmem>>, vector<16x128xf32>
    %c0_2 = arith.constant 0 : index
    %c0_3 = arith.constant 0 : index
    %4 = vector.load %arg3[%c0_2, %c0_3] : memref<16x128xf32, #tpu.memory_space<vmem>>, vector<16x128xf32>
    %5 = arith.subf %3, %4 : vector<16x128xf32>
    %6 = arith.mulf %5, %5 : vector<16x128xf32>
    %c0_4 = arith.constant 0 : index
    %c0_5 = arith.constant 0 : index
    %c0_6 = arith.constant 0 : index
    %7 = vector.load %arg4[%c0_4, %c0_5, %c0_6] : memref<1x1x16xf32, #tpu.memory_space<vmem>>, vector<1x1x16xf32>
    %8 = vector.shape_cast %7 : vector<1x1x16xf32> to vector<1x16xf32>
    %cst = arith.constant dense<0.000000e+00> : vector<1x128xf32>
    %9 = tpu.matmul %8, %6, %cst {dimension_numbers = #tpu.dot_dimension_numbers<[1], [0], [0], [1], [0, 0, 1, 1], [], []>, precision = #tpu.contract_precision<fp32>} : vector<1x16xf32>, vector<16x128xf32>, vector<1x128xf32> -> vector<1x128xf32>
    %c0_7 = arith.constant 0 : index
    %c0_8 = arith.constant 0 : index
    %c0_9 = arith.constant 0 : index
    %10 = vector.load %arg5[%c0_7, %c0_8, %c0_9] : memref<1x1x128xf32, #tpu.memory_space<vmem>>, vector<1x1x128xf32>
    %11 = vector.shape_cast %9 : vector<1x128xf32> to vector<1x1x128xf32>
    %12 = arith.addf %10, %11 : vector<1x1x128xf32>
    %c0_10 = arith.constant 0 : index
    %c0_11 = arith.constant 0 : index
    %c0_12 = arith.constant 0 : index
    %13 = vector.load %arg5[%c0_10, %c0_11, %c0_12] : memref<1x1x128xf32, #tpu.memory_space<vmem>>, vector<1x1x128xf32>
    tpu.vector_store %arg5[%c0_10, %c0_11, %c0_12], %12 {strides = array<i32>} : memref<1x1x128xf32, #tpu.memory_space<vmem>>, vector<1x1x128xf32>,
    return
  }
  func.func @transform_0(%arg0: i32, %arg1: i32) -> (i32, i32) {
    %c1_i32 = arith.constant 1 : i32
    %0 = arith.muli %arg0, %c1_i32 : i32
    %1 = arith.addi %0, %arg1 : i32
    %c0_i32 = arith.constant 0 : i32
    %c0_i32_0 = arith.constant 0 : i32
    return %1, %c0_i32 : i32, i32
  }
  func.func @transform_1(%arg0: i32, %arg1: i32) -> (i32, i32) {
    %c1_i32 = arith.constant 1 : i32
    %0 = arith.muli %arg0, %c1_i32 : i32
    %1 = arith.addi %0, %arg1 : i32
    %c0_i32 = arith.constant 0 : i32
    %c0_i32_0 = arith.constant 0 : i32
    return %1, %c0_i32 : i32, i32
  }
  func.func @transform_2(%arg0: i32, %arg1: i32) -> (i32, i32, i32) {
    %c1_i32 = arith.constant 1 : i32
    %0 = arith.muli %arg0, %c1_i32 : i32
    %1 = arith.addi %0, %arg1 : i32
    %c0_i32 = arith.constant 0 : i32
    %c0_i32_0 = arith.constant 0 : i32
    %c0_i32_1 = arith.constant 0 : i32
    return %1, %c0_i32, %c0_i32_0 : i32, i32, i32
  }
  func.func @transform_3(%arg0: i32, %arg1: i32) -> (i32, i32, i32) {
    %c0_i32 = arith.constant 0 : i32
    %c0_i32_0 = arith.constant 0 : i32
    %c0_i32_1 = arith.constant 0 : i32
    return %arg0, %c0_i32, %c0_i32_0 : i32, i32, i32
  }
}

</mosaic_0001>

<llo_original>
// kernel: tpu_custom_call.1
$region0: #{tpu_custom_call.1}
  #allocation0 [shape = 'u32[]', space=smem, size = 0x4, offset = 0x4, fixed_abs, tag = 'smem constant byte address 0x4 - core index']
  #allocation1 [shape = 'u32[144,128]{1,0:T(1,128)}', space=vmem, size = 0x12000, scoped, tag = 'internal scratch']
  %s0 = inlined_call_operand.hbm [shape: f32[16,128], index: 0, kind: input, shape index: {}]
  %s1 = inlined_call_operand.hbm [shape: f32[16,128], index: 1, kind: input, shape index: {}]
  %s2 = inlined_call_operand.vmem [shape: f32[1,1,16], index: 2, kind: input, shape index: {}]
  %s3 = inlined_call_operand.hbm [shape: f32[1,1,128], index: 3, kind: output, shape index: {}]
  %s4 = sld [smem:[#allocation0]]
  $region34: #{tpu_custom_call.1} parent=0
    _
  %s6 = ssub.s32 1, %s4
  %s7 = scalar_select 0, %s6, %s4
  $region1: #{tpu_custom_call.1} parent=0
    #allocation2 [shape = 'u8[8192]{0}', space=vmem, size = 0x2000, scoped, tag = 'input window, operand 0, single buffered']
    #allocation3 [shape = 's32[1]{0}', space=sflag, size = 0x4, scoped, tag = 'scoped memory for tpu_custom_call.1']
    #allocation4 [shape = 's32[1]{0}', space=sflag, size = 0x4, scoped, tag = 'scoped memory for tpu_custom_call.1']
    #allocation5 [shape = 'u8[8192]{0}', space=vmem, size = 0x2000, scoped, tag = 'input window, operand 1, single buffered']
    #allocation6 [shape = 's32[1]{0}', space=sflag, size = 0x4, scoped, tag = 'scoped memory for tpu_custom_call.1']
    #allocation7 [shape = 'u8[512]{0}', space=vmem, size = 0x400, scoped, tag = 'output window, operand 0, single buffered']
    %8 = vsyncpa [#allocation3], 0
    %9 = vsyncpa [#allocation6], 0
    %10 = vsyncpa [#allocation4], 0
    // Predicated region
    $region2: #{tpu_custom_call.1} parent=1 // pred_check
      _
    $region3: #{tpu_custom_call.1} parent=1 // pred_check_branch
      %12 = sbr.rel (0) target = $region5
    $region4: #{tpu_custom_call.1} parent=1 // pred_region
      %s13 = sadd.s32 0, 0
      %s14 = smul.u32 2, %s13
      %s16 = ssub.s32 256, 256
      %17 = vsyncadd [#allocation3], %s16
      %s18 = smul.addr %s14, 128
      %s19 = scalar_lea.hbm %s0, %s18
      %s20 = sshll.u32 [#allocation2], 4
      %s21 = int_to_ptr.vmem [resolvable:$true] %s20
      %26 = dma.hbm_to_vmem [thread:$0]  %s19, 256, %s21, [#allocation3], 128, 128, 8
    $region5: #{tpu_custom_call.1} parent=1 // pred_fallthru
      _
    // Predicated region
    $region6: #{tpu_custom_call.1} parent=1 // pred_check
      _
    $region7: #{tpu_custom_call.1} parent=1 // pred_check_branch
      %28 = sbr.rel (0) target = $region9
    $region8: #{tpu_custom_call.1} parent=1 // pred_region
      %s29 = sadd.s32 0, 0
      %s30 = smul.u32 2, %s29
      %s32 = ssub.s32 256, 256
      %33 = vsyncadd [#allocation6], %s32
      %s34 = smul.addr %s30, 128
      %s35 = scalar_lea.hbm %s1, %s34
      %s36 = sshll.u32 [#allocation5], 4
      %s37 = int_to_ptr.vmem [resolvable:$true] %s36
      %42 = dma.hbm_to_vmem [thread:$0]  %s35, 256, %s37, [#allocation6], 128, 128, 8
    $region9: #{tpu_custom_call.1} parent=1 // pred_fallthru
      _
    // Predicated region
    $region10: #{tpu_custom_call.1} parent=1 // pred_check
      _
    $region11: #{tpu_custom_call.1} parent=1 // pred_check_branch
      %44 = sbr.rel (0) target = $region13
    $region12: #{tpu_custom_call.1} parent=1 // pred_region
      %s45 = sadd.s32 0, 0
      %p46 = scmp.lt.s32.totalorder %s45, 0
      %s47 = scalar_select %p46, %s45, 0
      %s48 = scalar_lea.vmem %s2, %s47
      %s49 = sadd.s32 0, 0
    $region13: #{tpu_custom_call.1} parent=1 // pred_fallthru
      _
    // Predicated region
    $region14: #{tpu_custom_call.1} parent=1 // pred_check
      _
    $region15: #{tpu_custom_call.1} parent=1 // pred_check_branch
      %51 = sbr.rel (0) target = $region17
    $region16: #{tpu_custom_call.1} parent=1 // pred_region
      %52 = dma.done [#allocation3], 256
    $region17: #{tpu_custom_call.1} parent=1 // pred_fallthru
      _
    // Predicated region
    $region18: #{tpu_custom_call.1} parent=1 // pred_check
      _
    $region19: #{tpu_custom_call.1} parent=1 // pred_check_branch
      %54 = sbr.rel (0) target = $region21
    $region20: #{tpu_custom_call.1} parent=1 // pred_region
      %55 = dma.done [#allocation6], 256
    $region21: #{tpu_custom_call.1} parent=1 // pred_fallthru
      _
    %s56 = sadd.s32 0, 0
    %p57 = scmp.lt.s32.totalorder %s56, 0
    %s58 = scalar_select %p57, %s56, 0
    %s59 = scalar_lea.vmem %s2, %s58
    %s60 = sadd.s32 0, 0
    %s61 = smul.u32 2, %s60
    %s62 = sadd.s32 0, 0
    %s63 = smul.u32 2, %s62
    %s64 = sadd.s32 0, 0
    %p65 = scmp.lt.s32.totalorder %s64, 0
    %s66 = scalar_select %p65, %s64, 0
    %s67 = scalar_lea.vmem %s2, %s66
    %s68 = sadd.s32 0, 0
    %p69 = scmp.eq.s32.totalorder 0, 0
    // Predicated region
    $region22: #{tpu_custom_call.1} parent=1 // pred_check
      %p70 = pneg %p69
    $region23: #{tpu_custom_call.1} parent=1 // pred_check_branch
      %72 = sbr.rel (%p70) target = $region25
    $region24: #{tpu_custom_call.1} parent=1 // pred_region
      %73 = vst [vmem:[#allocation7] sm:$0x1] 0.0
    $region25: #{tpu_custom_call.1} parent=1 // pred_fallthru
      _
    %v74 = vld [vmem:[#allocation2] sm:$0xff]
    %v75 = vld [vmem:[#allocation2 + $0x8] sm:$0xff]
    %v76 = vld [vmem:[#allocation5] sm:$0xff]
    %v77 = vld [vmem:[#allocation5 + $0x8] sm:$0xff]
    %v78 = vsub.f32 %v74, %v76
    %v79 = vsub.f32 %v75, %v77
    %v80 = vmul.f32 %v78, %v78
    %v81 = vmul.f32 %v79, %v79
    %v82 = vld [vmem:[%s67] sm:$0x1]
    %vm83 = vcmask 130048
    %v85 = vsel %vm83, %v82, 0
    %87 = vmatprep.subr.mxu0 0.0
    %88 = vmatpush1.msra.mxu0 0.0
    %89 = vmatprep.subr.mxu0 0.0
    %90 = vmatpush1.msra.mxu0 0.0
    %91 = vmatprep.subr.mxu0 0.0
    %92 = vmatpush1.msra.mxu0 0.0
    %93 = vmatprep.subr.mxu0 0.0
    %94 = vmatpush1.msra.mxu0 0.0
    %95 = vmatprep.subr.mxu0 0.0
    %96 = vmatpush1.msra.mxu0 0.0
    %97 = vmatprep.subr.mxu0 0.0
    %98 = vmatpush1.msra.mxu0 0.0
    %99 = vmatprep.subr.mxu0 0.0
    %100 = vmatpush1.msra.mxu0 0.0
    %101 = vmatprep.subr.mxu0 0.0
    %102 = vmatpush1.msra.mxu0 0.0
    %103 = vmatprep.subr.mxu0 0.0
    %104 = vmatpush1.msra.mxu0 0.0
    %105 = vmatprep.subr.mxu0 0.0
    %106 = vmatpush1.msra.mxu0 0.0
    %107 = vmatprep.subr.mxu0 0.0
    %108 = vmatpush1.msra.mxu0 0.0
    %109 = vmatprep.subr.mxu0 0.0
    %110 = vmatpush1.msra.mxu0 0.0
    %111 = vmatprep.subr.mxu0 0.0
    %112 = vmatpush1.msra.mxu0 0.0
    %113 = vmatprep.subr.mxu0 0.0
    %114 = vmatpush1.msra.mxu0 0.0
    %115 = vmatprep.subr.mxu0 0.0
    %v116 = vand.u32 %v81, 4294901760
    %117 = vmatpush1.msra.mxu0 %v116
    %118 = vmatprep.subr.mxu0 0.0
    %v119 = vand.u32 %v80, 4294901760
    %120 = vmatpush1.msra.mxu0 %v119
    %121 = vmatprep.subr.mxu0 0.0
    %122 = vmatpush2.msra.mxu0 0.0
    %123 = vmatprep.subr.mxu0 0.0
    %124 = vmatpush2.msra.mxu0 0.0
    %125 = vmatprep.subr.mxu0 0.0
    %126 = vmatpush2.msra.mxu0 0.0
    %127 = vmatprep.subr.mxu0 0.0
    %128 = vmatpush2.msra.mxu0 0.0
    %129 = vmatprep.subr.mxu0 0.0
    %130 = vmatpush2.msra.mxu0 0.0
    %131 = vmatprep.subr.mxu0 0.0
    %132 = vmatpush2.msra.mxu0 0.0
    %133 = vmatprep.subr.mxu0 0.0
    %134 = vmatpush2.msra.mxu0 0.0
    %135 = vmatprep.subr.mxu0 0.0
    %136 = vmatpush2.msra.mxu0 0.0
    %137 = vmatprep.subr.mxu0 0.0
    %138 = vmatpush2.msra.mxu0 0.0
    %139 = vmatprep.subr.mxu0 0.0
    %140 = vmatpush2.msra.mxu0 0.0
    %141 = vmatprep.subr.mxu0 0.0
    %142 = vmatpush2.msra.mxu0 0.0
    %143 = vmatprep.subr.mxu0 0.0
    %144 = vmatpush2.msra.mxu0 0.0
    %145 = vmatprep.subr.mxu0 0.0
    %146 = vmatpush2.msra.mxu0 0.0
    %147 = vmatprep.subr.mxu0 0.0
    %148 = vmatpush2.msra.mxu0 0.0
    %149 = vmatprep.subr.mxu0 0.0
    %150 = vmatpush2.msra.mxu0 0.0
    %151 = vmatprep.subr.mxu0 0.0
    %152 = vmatpush2.msra.mxu0 0.0
    %153 = vmatprep.mubr.f32.mxu0 0.0
    %v154 = vand.u32 %v85, 4294901760
    %v155 = vsub.f32 %v85, %v154
    %v156 = vand.u32 %v155, 4294901760
    %v157 = vsub.f32 %v155, %v156
    %v158 = vand.u32 %v157, 4294901760
    %159 = vmatmul.mubr.f32.gmra.mxu0 %v158
    %v160 = vpop.f32.mrf.mxu0
    %v161 = vadd.f32 0.0, %v160
    %v162 = vpop.f32.mrf.mxu0
    %163 = vdwg.mxu0
    %164 = vmatprep.subr.mxu0 0.0
    %165 = vmatpush1.msra.mxu0 0.0
    %166 = vmatprep.subr.mxu0 0.0
    %167 = vmatpush1.msra.mxu0 0.0
    %168 = vmatprep.subr.mxu0 0.0
    %169 = vmatpush1.msra.mxu0 0.0
    %170 = vmatprep.subr.mxu0 0.0
    %171 = vmatpush1.msra.mxu0 0.0
    %172 = vmatprep.subr.mxu0 0.0
    %173 = vmatpush1.msra.mxu0 0.0
    %174 = vmatprep.subr.mxu0 0.0
    %175 = vmatpush1.msra.mxu0 0.0
    %176 = vmatprep.subr.mxu0 0.0
    %177 = vmatpush1.msra.mxu0 0.0
    %178 = vmatprep.subr.mxu0 0.0
    %179 = vmatpush1.msra.mxu0 0.0
    %180 = vmatprep.subr.mxu0 0.0
    %181 = vmatpush1.msra.mxu0 0.0
    %182 = vmatprep.subr.mxu0 0.0
    %183 = vmatpush1.msra.mxu0 0.0
    %184 = vmatprep.subr.mxu0 0.0
    %185 = vmatpush1.msra.mxu0 0.0
    %186 = vmatprep.subr.mxu0 0.0
    %187 = vmatpush1.msra.mxu0 0.0
    %188 = vmatprep.subr.mxu0 0.0
    %189 = vmatpush1.msra.mxu0 0.0
    %190 = vmatprep.subr.mxu0 0.0
    %191 = vmatpush1.msra.mxu0 0.0
    %192 = vmatprep.subr.mxu0 0.0
    %v193 = vand.u32 %v81, 4294901760
    %v194 = vsub.f32 %v81, %v193
    %v195 = vand.u32 %v194, 4294901760
    %v196 = vsub.f32 %v194, %v195
    %v197 = vand.u32 %v196, 4294901760
    %198 = vmatpush1.msra.mxu0 %v197
    %199 = vmatprep.subr.mxu0 0.0
    %v200 = vand.u32 %v80, 4294901760
    %v201 = vsub.f32 %v80, %v200
    %v202 = vand.u32 %v201, 4294901760
    %v203 = vsub.f32 %v201, %v202
    %v204 = vand.u32 %v203, 4294901760
    %205 = vmatpush1.msra.mxu0 %v204
    %206 = vmatprep.subr.mxu0 0.0
    %207 = vmatpush2.msra.mxu0 0.0
    %208 = vmatprep.subr.mxu0 0.0
    %209 = vmatpush2.msra.mxu0 0.0
    %210 = vmatprep.subr.mxu0 0.0
    %211 = vmatpush2.msra.mxu0 0.0
    %212 = vmatprep.subr.mxu0 0.0
    %213 = vmatpush2.msra.mxu0 0.0
    %214 = vmatprep.subr.mxu0 0.0
    %215 = vmatpush2.msra.mxu0 0.0
    %216 = vmatprep.subr.mxu0 0.0
    %217 = vmatpush2.msra.mxu0 0.0
    %218 = vmatprep.subr.mxu0 0.0
    %219 = vmatpush2.msra.mxu0 0.0
    %220 = vmatprep.subr.mxu0 0.0
    %221 = vmatpush2.msra.mxu0 0.0
    %222 = vmatprep.subr.mxu0 0.0
    %223 = vmatpush2.msra.mxu0 0.0
    %224 = vmatprep.subr.mxu0 0.0
    %225 = vmatpush2.msra.mxu0 0.0
    %226 = vmatprep.subr.mxu0 0.0
    %227 = vmatpush2.msra.mxu0 0.0
    %228 = vmatprep.subr.mxu0 0.0
    %229 = vmatpush2.msra.mxu0 0.0
    %230 = vmatprep.subr.mxu0 0.0
    %231 = vmatpush2.msra.mxu0 0.0
    %232 = vmatprep.subr.mxu0 0.0
    %233 = vmatpush2.msra.mxu0 0.0
    %234 = vmatprep.subr.mxu0 0.0
    %235 = vmatpush2.msra.mxu0 0.0
    %236 = vmatprep.subr.mxu0 0.0
    %237 = vmatpush2.msra.mxu0 0.0
    %238 = vmatprep.mubr.f32.mxu0 0.0
    %v239 = vand.u32 %v85, 4294901760
    %240 = vmatmul.mubr.f32.gmra.mxu0 %v239
    %v241 = vpop.f32.mrf.mxu0
    %v242 = vadd.f32 %v161, %v241
    %v243 = vpop.f32.mrf.mxu0
    %244 = vdwg.mxu0
    %245 = vmatprep.subr.mxu0 0.0
    %246 = vmatpush1.msra.mxu0 0.0
    %247 = vmatprep.subr.mxu0 0.0
    %248 = vmatpush1.msra.mxu0 0.0
    %249 = vmatprep.subr.mxu0 0.0
    %250 = vmatpush1.msra.mxu0 0.0
    %251 = vmatprep.subr.mxu0 0.0
    %252 = vmatpush1.msra.mxu0 0.0
    %253 = vmatprep.subr.mxu0 0.0
    %254 = vmatpush1.msra.mxu0 0.0
    %255 = vmatprep.subr.mxu0 0.0
    %256 = vmatpush1.msra.mxu0 0.0
    %257 = vmatprep.subr.mxu0 0.0
    %258 = vmatpush1.msra.mxu0 0.0
    %259 = vmatprep.subr.mxu0 0.0
    %260 = vmatpush1.msra.mxu0 0.0
    %261 = vmatprep.subr.mxu0 0.0
    %262 = vmatpush1.msra.mxu0 0.0
    %263 = vmatprep.subr.mxu0 0.0
    %264 = vmatpush1.msra.mxu0 0.0
    %265 = vmatprep.subr.mxu0 0.0
    %266 = vmatpush1.msra.mxu0 0.0
    %267 = vmatprep.subr.mxu0 0.0
    %268 = vmatpush1.msra.mxu0 0.0
    %269 = vmatprep.subr.mxu0 0.0
    %270 = vmatpush1.msra.mxu0 0.0
    %271 = vmatprep.subr.mxu0 0.0
    %272 = vmatpush1.msra.mxu0 0.0
    %273 = vmatprep.subr.mxu0 0.0
    %v274 = vand.u32 %v81, 4294901760
    %v275 = vsub.f32 %v81, %v274
    %276 = vmatpush1.msra.mxu0 %v275
    %277 = vmatprep.subr.mxu0 0.0
    %v278 = vand.u32 %v80, 4294901760
    %v279 = vsub.f32 %v80, %v278
    %280 = vmatpush1.msra.mxu0 %v279
    %281 = vmatprep.subr.mxu0 0.0
    %282 = vmatpush2.msra.mxu0 0.0
    %283 = vmatprep.subr.mxu0 0.0
    %284 = vmatpush2.msra.mxu0 0.0
    %285 = vmatprep.subr.mxu0 0.0
    %286 = vmatpush2.msra.mxu0 0.0
    %287 = vmatprep.subr.mxu0 0.0
    %288 = vmatpush2.msra.mxu0 0.0
    %289 = vmatprep.subr.mxu0 0.0
    %290 = vmatpush2.msra.mxu0 0.0
    %291 = vmatprep.subr.mxu0 0.0
    %292 = vmatpush2.msra.mxu0 0.0
    %293 = vmatprep.subr.mxu0 0.0
    %294 = vmatpush2.msra.mxu0 0.0
    %295 = vmatprep.subr.mxu0 0.0
    %296 = vmatpush2.msra.mxu0 0.0
    %297 = vmatprep.subr.mxu0 0.0
    %298 = vmatpush2.msra.mxu0 0.0
    %299 = vmatprep.subr.mxu0 0.0
    %300 = vmatpush2.msra.mxu0 0.0
    %301 = vmatprep.subr.mxu0 0.0
    %302 = vmatpush2.msra.mxu0 0.0
    %303 = vmatprep.subr.mxu0 0.0
    %304 = vmatpush2.msra.mxu0 0.0
    %305 = vmatprep.subr.mxu0 0.0
    %306 = vmatpush2.msra.mxu0 0.0
    %307 = vmatprep.subr.mxu0 0.0
    %308 = vmatpush2.msra.mxu0 0.0
    %309 = vmatprep.subr.mxu0 0.0
    %310 = vmatpush2.msra.mxu0 0.0
    %311 = vmatprep.subr.mxu0 0.0
    %312 = vmatpush2.msra.mxu0 0.0
    %313 = vmatprep.mubr.f32.mxu0 0.0
    %v314 = vand.u32 %v85, 4294901760
    %v315 = vsub.f32 %v85, %v314
    %316 = vmatmul.mubr.f32.gmra.mxu0 %v315
    %v317 = vpop.f32.mrf.mxu0
    %v318 = vadd.f32 %v242, %v317
    %v319 = vpop.f32.mrf.mxu0
    %320 = vdwg.mxu0
    %321 = vmatprep.subr.mxu0 0.0
    %322 = vmatpush1.msra.mxu0 0.0
    %323 = vmatprep.subr.mxu0 0.0
    %324 = vmatpush1.msra.mxu0 0.0
    %325 = vmatprep.subr.mxu0 0.0
    %326 = vmatpush1.msra.mxu0 0.0
    %327 = vmatprep.subr.mxu0 0.0
    %328 = vmatpush1.msra.mxu0 0.0
    %329 = vmatprep.subr.mxu0 0.0
    %330 = vmatpush1.msra.mxu0 0.0
    %331 = vmatprep.subr.mxu0 0.0
    %332 = vmatpush1.msra.mxu0 0.0
    %333 = vmatprep.subr.mxu0 0.0
    %334 = vmatpush1.msra.mxu0 0.0
    %335 = vmatprep.subr.mxu0 0.0
    %336 = vmatpush1.msra.mxu0 0.0
    %337 = vmatprep.subr.mxu0 0.0
    %338 = vmatpush1.msra.mxu0 0.0
    %339 = vmatprep.subr.mxu0 0.0
    %340 = vmatpush1.msra.mxu0 0.0
    %341 = vmatprep.subr.mxu0 0.0
    %342 = vmatpush1.msra.mxu0 0.0
    %343 = vmatprep.subr.mxu0 0.0
    %344 = vmatpush1.msra.mxu0 0.0
    %345 = vmatprep.subr.mxu0 0.0
    %346 = vmatpush1.msra.mxu0 0.0
    %347 = vmatprep.subr.mxu0 0.0
    %348 = vmatpush1.msra.mxu0 0.0
    %349 = vmatprep.subr.mxu0 0.0
    %v350 = vand.u32 %v81, 4294901760
    %351 = vmatpush1.msra.mxu0 %v350
    %352 = vmatprep.subr.mxu0 0.0
    %v353 = vand.u32 %v80, 4294901760
    %354 = vmatpush1.msra.mxu0 %v353
    %355 = vmatprep.subr.mxu0 0.0
    %356 = vmatpush2.msra.mxu0 0.0
    %357 = vmatprep.subr.mxu0 0.0
    %358 = vmatpush2.msra.mxu0 0.0
    %359 = vmatprep.subr.mxu0 0.0
    %360 = vmatpush2.msra.mxu0 0.0
    %361 = vmatprep.subr.mxu0 0.0
    %362 = vmatpush2.msra.mxu0 0.0
    %363 = vmatprep.subr.mxu0 0.0
    %364 = vmatpush2.msra.mxu0 0.0
    %365 = vmatprep.subr.mxu0 0.0
    %366 = vmatpush2.msra.mxu0 0.0
    %367 = vmatprep.subr.mxu0 0.0
    %368 = vmatpush2.msra.mxu0 0.0
    %369 = vmatprep.subr.mxu0 0.0
    %370 = vmatpush2.msra.mxu0 0.0
    %371 = vmatprep.subr.mxu0 0.0
    %372 = vmatpush2.msra.mxu0 0.0
    %373 = vmatprep.subr.mxu0 0.0
    %374 = vmatpush2.msra.mxu0 0.0
    %375 = vmatprep.subr.mxu0 0.0
    %376 = vmatpush2.msra.mxu0 0.0
    %377 = vmatprep.subr.mxu0 0.0
    %378 = vmatpush2.msra.mxu0 0.0
    %379 = vmatprep.subr.mxu0 0.0
    %380 = vmatpush2.msra.mxu0 0.0
    %381 = vmatprep.subr.mxu0 0.0
    %382 = vmatpush2.msra.mxu0 0.0
    %383 = vmatprep.subr.mxu0 0.0
    %384 = vmatpush2.msra.mxu0 0.0
    %385 = vmatprep.subr.mxu0 0.0
    %386 = vmatpush2.msra.mxu0 0.0
    %387 = vmatprep.mubr.f32.mxu0 0.0
    %v388 = vand.u32 %v85, 4294901760
    %v389 = vsub.f32 %v85, %v388
    %v390 = vand.u32 %v389, 4294901760
    %391 = vmatmul.mubr.f32.gmra.mxu0 %v390
    %v392 = vpop.f32.mrf.mxu0
    %v393 = vadd.f32 %v318, %v392
    %v394 = vpop.f32.mrf.mxu0
    %395 = vdwg.mxu0
    %396 = vmatprep.subr.mxu0 0.0
    %397 = vmatpush1.msra.mxu0 0.0
    %398 = vmatprep.subr.mxu0 0.0
    %399 = vmatpush1.msra.mxu0 0.0
    %400 = vmatprep.subr.mxu0 0.0
    %401 = vmatpush1.msra.mxu0 0.0
    %402 = vmatprep.subr.mxu0 0.0
    %403 = vmatpush1.msra.mxu0 0.0
    %404 = vmatprep.subr.mxu0 0.0
    %405 = vmatpush1.msra.mxu0 0.0
    %406 = vmatprep.subr.mxu0 0.0
    %407 = vmatpush1.msra.mxu0 0.0
    %408 = vmatprep.subr.mxu0 0.0
    %409 = vmatpush1.msra.mxu0 0.0
    %410 = vmatprep.subr.mxu0 0.0
    %411 = vmatpush1.msra.mxu0 0.0
    %412 = vmatprep.subr.mxu0 0.0
    %413 = vmatpush1.msra.mxu0 0.0
    %414 = vmatprep.subr.mxu0 0.0
    %415 = vmatpush1.msra.mxu0 0.0
    %416 = vmatprep.subr.mxu0 0.0
    %417 = vmatpush1.msra.mxu0 0.0
    %418 = vmatprep.subr.mxu0 0.0
    %419 = vmatpush1.msra.mxu0 0.0
    %420 = vmatprep.subr.mxu0 0.0
    %421 = vmatpush1.msra.mxu0 0.0
    %422 = vmatprep.subr.mxu0 0.0
    %423 = vmatpush1.msra.mxu0 0.0
    %424 = vmatprep.subr.mxu0 0.0
    %v425 = vand.u32 %v81, 4294901760
    %v426 = vsub.f32 %v81, %v425
    %v427 = vand.u32 %v426, 4294901760
    %428 = vmatpush1.msra.mxu0 %v427
    %429 = vmatprep.subr.mxu0 0.0
    %v430 = vand.u32 %v80, 4294901760
    %v431 = vsub.f32 %v80, %v430
    %v432 = vand.u32 %v431, 4294901760
    %433 = vmatpush1.msra.mxu0 %v432
    %434 = vmatprep.subr.mxu0 0.0
    %435 = vmatpush2.msra.mxu0 0.0
    %436 = vmatprep.subr.mxu0 0.0
    %437 = vmatpush2.msra.mxu0 0.0
    %438 = vmatprep.subr.mxu0 0.0
    %439 = vmatpush2.msra.mxu0 0.0
    %440 = vmatprep.subr.mxu0 0.0
    %441 = vmatpush2.msra.mxu0 0.0
    %442 = vmatprep.subr.mxu0 0.0
    %443 = vmatpush2.msra.mxu0 0.0
    %444 = vmatprep.subr.mxu0 0.0
    %445 = vmatpush2.msra.mxu0 0.0
    %446 = vmatprep.subr.mxu0 0.0
    %447 = vmatpush2.msra.mxu0 0.0
    %448 = vmatprep.subr.mxu0 0.0
    %449 = vmatpush2.msra.mxu0 0.0
    %450 = vmatprep.subr.mxu0 0.0
    %451 = vmatpush2.msra.mxu0 0.0
    %452 = vmatprep.subr.mxu0 0.0
    %453 = vmatpush2.msra.mxu0 0.0
    %454 = vmatprep.subr.mxu0 0.0
    %455 = vmatpush2.msra.mxu0 0.0
    %456 = vmatprep.subr.mxu0 0.0
    %457 = vmatpush2.msra.mxu0 0.0
    %458 = vmatprep.subr.mxu0 0.0
    %459 = vmatpush2.msra.mxu0 0.0
    %460 = vmatprep.subr.mxu0 0.0
    %461 = vmatpush2.msra.mxu0 0.0
    %462 = vmatprep.subr.mxu0 0.0
    %463 = vmatpush2.msra.mxu0 0.0
    %464 = vmatprep.subr.mxu0 0.0
    %465 = vmatpush2.msra.mxu0 0.0
    %466 = vmatprep.mubr.f32.mxu0 0.0
    %v467 = vand.u32 %v85, 4294901760
    %468 = vmatmul.mubr.f32.gmra.mxu0 %v467
    %v469 = vpop.f32.mrf.mxu0
    %v470 = vadd.f32 %v393, %v469
    %v471 = vpop.f32.mrf.mxu0
    %472 = vdwg.mxu0
    %473 = vmatprep.subr.mxu0 0.0
    %474 = vmatpush1.msra.mxu0 0.0
    %475 = vmatprep.subr.mxu0 0.0
    %476 = vmatpush1.msra.mxu0 0.0
    %477 = vmatprep.subr.mxu0 0.0
    %478 = vmatpush1.msra.mxu0 0.0
    %479 = vmatprep.subr.mxu0 0.0
    %480 = vmatpush1.msra.mxu0 0.0
    %481 = vmatprep.subr.mxu0 0.0
    %482 = vmatpush1.msra.mxu0 0.0
    %483 = vmatprep.subr.mxu0 0.0
    %484 = vmatpush1.msra.mxu0 0.0
    %485 = vmatprep.subr.mxu0 0.0
    %486 = vmatpush1.msra.mxu0 0.0
    %487 = vmatprep.subr.mxu0 0.0
    %488 = vmatpush1.msra.mxu0 0.0
    %489 = vmatprep.subr.mxu0 0.0
    %490 = vmatpush1.msra.mxu0 0.0
    %491 = vmatprep.subr.mxu0 0.0
    %492 = vmatpush1.msra.mxu0 0.0
    %493 = vmatprep.subr.mxu0 0.0
    %494 = vmatpush1.msra.mxu0 0.0
    %495 = vmatprep.subr.mxu0 0.0
    %496 = vmatpush1.msra.mxu0 0.0
    %497 = vmatprep.subr.mxu0 0.0
    %498 = vmatpush1.msra.mxu0 0.0
    %499 = vmatprep.subr.mxu0 0.0
    %500 = vmatpush1.msra.mxu0 0.0
    %501 = vmatprep.subr.mxu0 0.0
    %v502 = vand.u32 %v81, 4294901760
    %503 = vmatpush1.msra.mxu0 %v502
    %504 = vmatprep.subr.mxu0 0.0
    %v505 = vand.u32 %v80, 4294901760
    %506 = vmatpush1.msra.mxu0 %v505
    %507 = vmatprep.subr.mxu0 0.0
    %508 = vmatpush2.msra.mxu0 0.0
    %509 = vmatprep.subr.mxu0 0.0
    %510 = vmatpush2.msra.mxu0 0.0
    %511 = vmatprep.subr.mxu0 0.0
    %512 = vmatpush2.msra.mxu0 0.0
    %513 = vmatprep.subr.mxu0 0.0
    %514 = vmatpush2.msra.mxu0 0.0
    %515 = vmatprep.subr.mxu0 0.0
    %516 = vmatpush2.msra.mxu0 0.0
    %517 = vmatprep.subr.mxu0 0.0
    %518 = vmatpush2.msra.mxu0 0.0
    %519 = vmatprep.subr.mxu0 0.0
    %520 = vmatpush2.msra.mxu0 0.0
    %521 = vmatprep.subr.mxu0 0.0
    %522 = vmatpush2.msra.mxu0 0.0
    %523 = vmatprep.subr.mxu0 0.0
    %524 = vmatpush2.msra.mxu0 0.0
    %525 = vmatprep.subr.mxu0 0.0
    %526 = vmatpush2.msra.mxu0 0.0
    %527 = vmatprep.subr.mxu0 0.0
    %528 = vmatpush2.msra.mxu0 0.0
    %529 = vmatprep.subr.mxu0 0.0
    %530 = vmatpush2.msra.mxu0 0.0
    %531 = vmatprep.subr.mxu0 0.0
    %532 = vmatpush2.msra.mxu0 0.0
    %533 = vmatprep.subr.mxu0 0.0
    %534 = vmatpush2.msra.mxu0 0.0
    %535 = vmatprep.subr.mxu0 0.0
    %536 = vmatpush2.msra.mxu0 0.0
    %537 = vmatprep.subr.mxu0 0.0
    %538 = vmatpush2.msra.mxu0 0.0
    %539 = vmatprep.mubr.f32.mxu0 0.0
    %v540 = vand.u32 %v85, 4294901760
    %541 = vmatmul.mubr.f32.gmra.mxu0 %v540
    %v542 = vpop.f32.mrf.mxu0
    %v543 = vadd.f32 %v470, %v542
    %v544 = vpop.f32.mrf.mxu0
    %545 = vdwg.mxu0
    %v546 = vld [vmem:[#allocation7] sm:$0x1]
    %v547 = vadd.f32 %v546, %v543
    %548 = vst [vmem:[#allocation7] sm:$0x1] %v547
    // Predicated region
    $region26: #{tpu_custom_call.1} parent=1 // pred_check
      _
    $region27: #{tpu_custom_call.1} parent=1 // pred_check_branch
      %550 = sbr.rel (0) target = $region29
    $region28: #{tpu_custom_call.1} parent=1 // pred_region
      %s552 = ssub.s32 16, 16
      %553 = vsyncadd [#allocation4], %s552
      %s555 = sshll.u32 [#allocation7], 4
      %s556 = int_to_ptr.vmem [resolvable:$true] %s555
      %558 = dma.vmem_to_hbm [thread:$0]  %s556, 16, %s3, [#allocation4]
    $region29: #{tpu_custom_call.1} parent=1 // pred_fallthru
      _
    // Predicated region
    $region30: #{tpu_custom_call.1} parent=1 // pred_check
      _
    $region31: #{tpu_custom_call.1} parent=1 // pred_check_branch
      %560 = sbr.rel (0) target = $region33
    $region32: #{tpu_custom_call.1} parent=1 // pred_region
      %561 = dma.done [#allocation4], 16
    $region33: #{tpu_custom_call.1} parent=1 // pred_fallthru
      _
    %562 = vsyncpa [#allocation3], 1
    %563 = vsyncpa [#allocation6], 1
    %564 = vsyncpa [#allocation4], 1

</llo_original>
